<compile_context>
chip_gen: v7x
topology: tpu7x:2x2x1
jax: 0.10.0
libtpu: 0.0.40
codegen_flags: <defaults>
</compile_context>

<pallas_src>
import functools

import jax
import jax.numpy as jnp
from jax.experimental import pallas as pl
from jax.experimental.pallas import tpu as pltpu


def _round_up(a: int, b: int) -> int:
    return (a + b - 1) // b * b


def _dropout_dense_kernel(seed_ref, *refs,
                          apply_mask: bool, eval_scale: float, thr31: int,
                          has_bias: bool, tm: int, tk: int, in_cols: int):
    if has_bias:
        x_ref, w_ref, b_ref, o_ref, acc_ref = refs
    else:
        x_ref, w_ref, o_ref, acc_ref = refs
        b_ref = None

    k = pl.program_id(2)

    @pl.when(k == 0)
    def _init():
        acc_ref[...] = jnp.zeros_like(acc_ref)

    x = x_ref[...]

    if apply_mask:
        # Global element index of every x entry in this (tm, tk) tile.
        row = jax.lax.broadcasted_iota(jnp.int32, (tm, tk), 0) + pl.program_id(0) * tm
        col = jax.lax.broadcasted_iota(jnp.int32, (tm, tk), 1) + k * tk
        h = row * in_cols + col + seed_ref[0] * 668265295        # 0x27D4EB2F

        # lowbias32-style integer mix; int32 arithmetic wraps, logical right
        # shifts emulated with a mask so no unsigned ops are needed.
        h = h ^ ((h >> 16) & 0xFFFF)
        h = h * 2129077549                                        # 0x7FEB352D
        h = h ^ ((h >> 15) & 0x1FFFF)
        h = h * (-2073123189)                                     # 0x846CA68B as int32
        h = h ^ ((h >> 16) & 0xFFFF)

        r = h & 0x7FFFFFFF                                        # 31 uniform bits >= 0
        # keep element iff r < keep * 2^31  (integer threshold compare + select)
        x = jnp.where(r < thr31, x, jnp.zeros_like(x))
    elif eval_scale != 1.0:
        # eval: get_eps() returns the constant (1 - droprate)
        x = x * jnp.asarray(eval_scale, dtype=x.dtype)

    acc_ref[...] += jnp.dot(x, w_ref[...], preferred_element_type=jnp.float32)

    @pl.when(k == pl.num_programs(2) - 1)
    def _finish():
        out = acc_ref[...]
        if has_bias:
            out = out + b_ref[...]
        o_ref[...] = out.astype(o_ref.dtype)


def dropout_dense(x, weight, bias, seed, *, droprate=0.5, training=True,
                  tm=256, tn=256, tk=512):
    """x: (B, IN) f32, weight: (IN, OUT) f32, bias: (OUT,) f32 or None."""
    B, IN = x.shape
    IN_w, OUT = weight.shape
    assert IN_w == IN

    keep = 1.0 - float(droprate)
    apply_mask = (droprate > 0.0) and training
    eval_scale = keep if (droprate > 0.0 and not training) else 1.0
    # P(keep) threshold on 31 uniform bits.
    thr31 = min(int(round(keep * (1 << 31))), (1 << 31) - 1)
    has_bias = bias is not None

    # --- pad to TPU-friendly shapes (sublane 8 / lane 128), clamp tile sizes ---
    B_p = _round_up(B, 8)
    IN_p = _round_up(IN, 128)
    OUT_p = _round_up(OUT, 128)
    tm = min(tm, B_p)
    tn = min(tn, OUT_p)
    tk = min(tk, IN_p)
    B_p = _round_up(B_p, tm)
    IN_p = _round_up(IN_p, tk)
    OUT_p = _round_up(OUT_p, tn)

    x_p = x if (B_p == B and IN_p == IN) else jnp.pad(x, ((0, B_p - B), (0, IN_p - IN)))
    w_p = weight if (IN_p == IN and OUT_p == OUT) else jnp.pad(
        weight, ((0, IN_p - IN), (0, OUT_p - OUT)))

    seed_arr = jnp.asarray([seed], dtype=jnp.int32)

    kernel = functools.partial(
        _dropout_dense_kernel,
        apply_mask=apply_mask, eval_scale=eval_scale, thr31=thr31,
        has_bias=has_bias, tm=tm, tk=tk, in_cols=IN_p)

    in_specs = [
        pl.BlockSpec((tm, tk), lambda i, j, k, s: (i, k)),   # x tile
        pl.BlockSpec((tk, tn), lambda i, j, k, s: (k, j)),   # W tile
    ]
    inputs = [seed_arr, x_p, w_p]
    if has_bias:
        b_p = bias if OUT_p == OUT else jnp.pad(bias, (0, OUT_p - OUT))
        inputs.append(b_p.reshape(1, OUT_p))
        in_specs.append(pl.BlockSpec((1, tn), lambda i, j, k, s: (0, j)))

    grid = (B_p // tm, OUT_p // tn, IN_p // tk)

    out_p = pl.pallas_call(
        kernel,
        out_shape=jax.ShapeDtypeStruct((B_p, OUT_p), x.dtype),
        grid_spec=pltpu.PrefetchScalarGridSpec(
            num_scalar_prefetch=1,              # seed lands in SMEM
            grid=grid,
            in_specs=in_specs,
            out_specs=pl.BlockSpec((tm, tn), lambda i, j, k, s: (i, j)),
            scratch_shapes=[pltpu.VMEM((tm, tn), jnp.float32)]),
        compiler_params=pltpu.CompilerParams(
            dimension_semantics=("parallel", "parallel", "arbitrary"),
            vmem_limit_bytes=32 * 1024 * 1024),
    )(*inputs)

    if B_p != B or OUT_p != OUT:
        out_p = out_p[:B, :OUT]
    return out_p


if __name__ == "__main__":
    # Small shapes consistent with the module: in_features=32, out_features=64, batch=8.
    # TODO(synk): at this demo scale a pallas_call is pure launch overhead; the tiled
    # kernel only pays off at realistic IN/OUT sizes (or when fused into a larger kernel).
    B, IN, OUT = 8, 32, 64
    droprate = 0.5

    key = jax.random.PRNGKey(0)
    kx, kw, kb = jax.random.split(key, 3)

    x = jax.random.normal(kx, (B, IN), dtype=jnp.float32)
    # kaiming_normal_(mode='fan_out') on a (IN, OUT) tensor -> fan = IN, std = sqrt(2 / IN)
    weight = jax.random.normal(kw, (IN, OUT), dtype=jnp.float32) * jnp.sqrt(2.0 / IN)
    # bias ~ Normal(0, 0.01)
    bias = jax.random.normal(kb, (OUT,), dtype=jnp.float32) * 0.01

    # Training-mode forward (stochastic Bernoulli mask generated in-kernel).
    out_train = dropout_dense(x, weight, bias, seed=42,
                              droprate=droprate, training=True)
    jax.block_until_ready(out_train)
    assert out_train.shape == (B, OUT)
    assert bool(jnp.all(jnp.isfinite(out_train)))

    # Eval-mode forward (deterministic: scale by 1 - droprate), check vs. pure JAX.
    out_eval = dropout_dense(x, weight, bias, seed=0,
                             droprate=droprate, training=False)
    jax.block_until_ready(out_eval)
    ref_eval = (x * (1.0 - droprate)) @ weight + bias[None, :]
    assert jnp.allclose(out_eval, ref_eval, atol=1e-5, rtol=1e-5)

    # bias=False / droprate=0 path: plain dense matmul, no bias stream.
    out_nobias = dropout_dense(x, weight, None, seed=1, droprate=0.0, training=True)
    jax.block_until_ready(out_nobias)
    assert jnp.allclose(out_nobias, x @ weight, atol=1e-5, rtol=1e-5)

    print("KERNEL_OK")
</pallas_src>

<mosaic_0001>
module attributes {stable_mosaic.version = 11 : i64} {
  func.func @_dropout_dense_kernel(%arg0: i32, %arg1: i32, %arg2: i32, %arg3: memref<1xi32, #tpu.memory_space<smem>>, %arg4: memref<8x128xf32, #tpu.memory_space<vmem>>, %arg5: memref<128x128xf32, #tpu.memory_space<vmem>>, %arg6: memref<1x128xf32, #tpu.memory_space<vmem>>, %arg7: memref<8x128xf32, #tpu.memory_space<vmem>>, %arg8: memref<8x128xf32, #tpu.memory_space<vmem>>) attributes {dimension_semantics = [#tpu.dimension_semantics<parallel>, #tpu.dimension_semantics<parallel>, #tpu.dimension_semantics<arbitrary>], iteration_bounds = array<i64: 1, 1, 1>, scalar_prefetch = 1 : i64, scratch_operands = 1 : i64, tpu.core_type = #tpu.core_type<tc>, window_params = [{transform_indices = @transform_0, window_bounds = array<i64: 8, 128>}, {transform_indices = @transform_1, window_bounds = array<i64: 128, 128>}, {transform_indices = @transform_2, window_bounds = array<i64: 1, 128>}, {transform_indices = @transform_3, window_bounds = array<i64: 8, 128>}]} {
    %c0_i32 = arith.constant 0 : i32
    %0 = arith.cmpi eq, %arg2, %c0_i32 : i32
    %1 = arith.extui %0 : i1 to i32
    %c0_i32_0 = arith.constant 0 : i32
    %2 = arith.cmpi ne, %1, %c0_i32_0 : i32
    scf.if %2 {
      %cst_15 = arith.constant 0.000000e+00 : f32
      %52 = vector.broadcast %cst_15 : f32 to vector<8x128xf32>
      %c0_16 = arith.constant 0 : index
      %c0_17 = arith.constant 0 : index
      %53 = vector.load %arg8[%c0_16, %c0_17] : memref<8x128xf32, #tpu.memory_space<vmem>>, vector<8x128xf32>
      tpu.vector_store %arg8[%c0_16, %c0_17], %52 {strides = array<i32>} : memref<8x128xf32, #tpu.memory_space<vmem>>, vector<8x128xf32>,
    } else {
    }
    %c0 = arith.constant 0 : index
    %c0_1 = arith.constant 0 : index
    %3 = vector.load %arg4[%c0, %c0_1] : memref<8x128xf32, #tpu.memory_space<vmem>>, vector<8x128xf32>
    %4 = tpu.iota {dimensions = array<i32: 0>} : vector<8x128xi32>
    %c8_i32 = arith.constant 8 : i32
    %5 = arith.muli %arg0, %c8_i32 : i32
    %6 = vector.broadcast %5 : i32 to vector<8x128xi32>
    %7 = arith.addi %4, %6 : vector<8x128xi32>
    %8 = tpu.iota {dimensions = array<i32: 1>} : vector<8x128xi32>
    %c128_i32 = arith.constant 128 : i32
    %9 = arith.muli %arg2, %c128_i32 : i32
    %10 = vector.broadcast %9 : i32 to vector<8x128xi32>
    %11 = arith.addi %8, %10 : vector<8x128xi32>
    %c128_i32_2 = arith.constant 128 : i32
    %12 = vector.broadcast %c128_i32_2 : i32 to vector<8x128xi32>
    %13 = arith.muli %7, %12 : vector<8x128xi32>
    %14 = arith.addi %13, %11 : vector<8x128xi32>
    %c0_3 = arith.constant 0 : index
    %15 = memref.load %arg3[%c0_3] : memref<1xi32, #tpu.memory_space<smem>>
    %c668265295_i32 = arith.constant 668265295 : i32
    %16 = arith.muli %15, %c668265295_i32 : i32
    %17 = vector.broadcast %16 : i32 to vector<8x128xi32>
    %18 = arith.addi %14, %17 : vector<8x128xi32>
    %c16_i32 = arith.constant 16 : i32
    %19 = vector.broadcast %c16_i32 : i32 to vector<8x128xi32>
    %20 = arith.shrsi %18, %19 : vector<8x128xi32>
    %c65535_i32 = arith.constant 65535 : i32
    %21 = vector.broadcast %c65535_i32 : i32 to vector<8x128xi32>
    %22 = arith.andi %20, %21 : vector<8x128xi32>
    %23 = arith.xori %18, %22 : vector<8x128xi32>
    %c2129077549_i32 = arith.constant 2129077549 : i32
    %24 = vector.broadcast %c2129077549_i32 : i32 to vector<8x128xi32>
    %25 = arith.muli %23, %24 : vector<8x128xi32>
    %c15_i32 = arith.constant 15 : i32
    %26 = vector.broadcast %c15_i32 : i32 to vector<8x128xi32>
    %27 = arith.shrsi %25, %26 : vector<8x128xi32>
    %c131071_i32 = arith.constant 131071 : i32
    %28 = vector.broadcast %c131071_i32 : i32 to vector<8x128xi32>
    %29 = arith.andi %27, %28 : vector<8x128xi32>
    %30 = arith.xori %25, %29 : vector<8x128xi32>
    %c-2073123189_i32 = arith.constant -2073123189 : i32
    %31 = vector.broadcast %c-2073123189_i32 : i32 to vector<8x128xi32>
    %32 = arith.muli %30, %31 : vector<8x128xi32>
    %c16_i32_4 = arith.constant 16 : i32
    %33 = vector.broadcast %c16_i32_4 : i32 to vector<8x128xi32>
    %34 = arith.shrsi %32, %33 : vector<8x128xi32>
    %c65535_i32_5 = arith.constant 65535 : i32
    %35 = vector.broadcast %c65535_i32_5 : i32 to vector<8x128xi32>
    %36 = arith.andi %34, %35 : vector<8x128xi32>
    %37 = arith.xori %32, %36 : vector<8x128xi32>
    %c2147483647_i32 = arith.constant 2147483647 : i32
    %38 = vector.broadcast %c2147483647_i32 : i32 to vector<8x128xi32>
    %39 = arith.andi %37, %38 : vector<8x128xi32>
    %c1073741824_i32 = arith.constant 1073741824 : i32
    %40 = vector.broadcast %c1073741824_i32 : i32 to vector<8x128xi32>
    %41 = arith.cmpi slt, %39, %40 : vector<8x128xi32>
    %cst = arith.constant 0.000000e+00 : f32
    %42 = vector.broadcast %cst : f32 to vector<8x128xf32>
    %43 = arith.select %41, %3, %42 : vector<8x128xi1>, vector<8x128xf32>
    %c0_6 = arith.constant 0 : index
    %c0_7 = arith.constant 0 : index
    %44 = vector.load %arg8[%c0_6, %c0_7] : memref<8x128xf32, #tpu.memory_space<vmem>>, vector<8x128xf32>
    %c0_8 = arith.constant 0 : index
    %c0_9 = arith.constant 0 : index
    %45 = vector.load %arg5[%c0_8, %c0_9] : memref<128x128xf32, #tpu.memory_space<vmem>>, vector<128x128xf32>
    %cst_10 = arith.constant dense<0.000000e+00> : vector<8x128xf32>
    %46 = tpu.matmul %43, %45, %cst_10 {dimension_numbers = #tpu.dot_dimension_numbers<[1], [0], [0], [1], [0, 0, 1, 1], [], []>} : vector<8x128xf32>, vector<128x128xf32>, vector<8x128xf32> -> vector<8x128xf32>
    %47 = arith.addf %44, %46 : vector<8x128xf32>
    %c0_11 = arith.constant 0 : index
    %c0_12 = arith.constant 0 : index
    %48 = vector.load %arg8[%c0_11, %c0_12] : memref<8x128xf32, #tpu.memory_space<vmem>>, vector<8x128xf32>
    tpu.vector_store %arg8[%c0_11, %c0_12], %47 {strides = array<i32>} : memref<8x128xf32, #tpu.memory_space<vmem>>, vector<8x128xf32>,
    %c0_i32_13 = arith.constant 0 : i32
    %49 = arith.cmpi eq, %arg2, %c0_i32_13 : i32
    %50 = arith.extui %49 : i1 to i32
    %c0_i32_14 = arith.constant 0 : i32
    %51 = arith.cmpi ne, %50, %c0_i32_14 : i32
    scf.if %51 {
      %c0_15 = arith.constant 0 : index
      %c0_16 = arith.constant 0 : index
      %52 = vector.load %arg8[%c0_15, %c0_16] : memref<8x128xf32, #tpu.memory_space<vmem>>, vector<8x128xf32>
      %c0_17 = arith.constant 0 : index
      %c0_18 = arith.constant 0 : index
      %53 = vector.load %arg6[%c0_17, %c0_18] : memref<1x128xf32, #tpu.memory_space<vmem>>, vector<1x128xf32>
      %54 = vector.broadcast %53 : vector<1x128xf32> to vector<8x128xf32>
      %55 = arith.addf %52, %54 : vector<8x128xf32>
      %c0_19 = arith.constant 0 : index
      %c0_20 = arith.constant 0 : index
      %56 = vector.load %arg7[%c0_19, %c0_20] : memref<8x128xf32, #tpu.memory_space<vmem>>, vector<8x128xf32>
      tpu.vector_store %arg7[%c0_19, %c0_20], %55 {strides = array<i32>} : memref<8x128xf32, #tpu.memory_space<vmem>>, vector<8x128xf32>,
    } else {
    }
    return
  }
  func.func @transform_0(%arg0: i32, %arg1: i32, %arg2: i32, %arg3: memref<1xi32, #tpu.memory_space<smem>>) -> (i32, i32) {
    %c0_i32 = arith.constant 0 : i32
    return %arg0, %arg2 : i32, i32
  }
  func.func @transform_1(%arg0: i32, %arg1: i32, %arg2: i32, %arg3: memref<1xi32, #tpu.memory_space<smem>>) -> (i32, i32) {
    %c0_i32 = arith.constant 0 : i32
    return %arg2, %arg1 : i32, i32
  }
  func.func @transform_2(%arg0: i32, %arg1: i32, %arg2: i32, %arg3: memref<1xi32, #tpu.memory_space<smem>>) -> (i32, i32) {
    %c0_i32 = arith.constant 0 : i32
    %c0_i32_0 = arith.constant 0 : i32
    return %c0_i32, %arg1 : i32, i32
  }
  func.func @transform_3(%arg0: i32, %arg1: i32, %arg2: i32, %arg3: memref<1xi32, #tpu.memory_space<smem>>) -> (i32, i32) {
    %c0_i32 = arith.constant 0 : i32
    return %arg0, %arg1 : i32, i32
  }
}

</mosaic_0001>

<llo_original>
// kernel: tpu_custom_call.1
$region0: #{tpu_custom_call.1}
  #allocation0 [shape = 'u32[]', space=smem, size = 0x4, offset = 0x4, fixed_abs, tag = 'smem constant byte address 0x4 - core index']
  #allocation1 [shape = 'u32[144,128]{1,0:T(1,128)}', space=vmem, size = 0x12000, scoped, tag = 'internal scratch']
  #allocation2 [shape = 'f32[8,128]{1,0:T(8,128)}', space=vmem, size = 0x1000, scoped, tag = 'scratch operand']
  #allocation3 [shape = 's32[1]{0}', space=sflag, size = 0x4, scoped, tag = 'scoped memory for tpu_custom_call.1']
  #allocation4 [shape = 's32[1]{0:T(128)S(6)}', space=smem, size = 0x200, scoped, tag = 'prefetched SMEM operand 0']
  %s0 = inlined_call_operand.<no memory space> [shape: s32[1], index: 0, kind: input, shape index: {}]
  %s1 = inlined_call_operand.hbm [shape: f32[8,128], index: 1, kind: input, shape index: {}]
  %s2 = inlined_call_operand.hbm [shape: f32[128,128], index: 2, kind: input, shape index: {}]
  %s3 = inlined_call_operand.vmem [shape: f32[1,128], index: 3, kind: input, shape index: {}]
  %s4 = inlined_call_operand.hbm [shape: f32[8,128], index: 4, kind: output, shape index: {}]
  %s5 = sld [smem:[#allocation0]]
  $region38: #{tpu_custom_call.1} parent=0
    _
  %s7 = ssub.s32 1, %s5
  %s8 = scalar_select 0, %s7, %s5
  %9 = sst [smem:[#allocation4]] %s0
  $region1: #{tpu_custom_call.1} parent=0
    #allocation5 [shape = 'u8[4096]{0}', space=vmem, size = 0x1000, scoped, tag = 'input window, operand 1, single buffered']
    #allocation6 [shape = 's32[1]{0}', space=sflag, size = 0x4, scoped, tag = 'scoped memory for tpu_custom_call.1']
    #allocation7 [shape = 's32[1]{0}', space=sflag, size = 0x4, scoped, tag = 'scoped memory for tpu_custom_call.1']
    #allocation8 [shape = 'u8[65536]{0}', space=vmem, size = 0x10000, scoped, tag = 'input window, operand 2, single buffered']
    #allocation9 [shape = 's32[1]{0}', space=sflag, size = 0x4, scoped, tag = 'scoped memory for tpu_custom_call.1']
    #allocation10 [shape = 'u8[4096]{0}', space=vmem, size = 0x1000, scoped, tag = 'output window, operand 0, single buffered']
    %10 = vsyncpa [#allocation6], 0
    %11 = vsyncpa [#allocation9], 0
    %12 = vsyncpa [#allocation7], 0
    // Predicated region
    $region2: #{tpu_custom_call.1} parent=1 // pred_check
      _
    $region3: #{tpu_custom_call.1} parent=1 // pred_check_branch
      %14 = sbr.rel (0) target = $region5
    $region4: #{tpu_custom_call.1} parent=1 // pred_region
      %s16 = ssub.s32 128, 128
      %17 = vsyncadd [#allocation6], %s16
      %s19 = sshll.u32 [#allocation5], 4
      %s20 = int_to_ptr.vmem [resolvable:$true] %s19
      %22 = dma.hbm_to_vmem [thread:$0]  %s1, 128, %s20, [#allocation6]
    $region5: #{tpu_custom_call.1} parent=1 // pred_fallthru
      _
    // Predicated region
    $region6: #{tpu_custom_call.1} parent=1 // pred_check
      _
    $region7: #{tpu_custom_call.1} parent=1 // pred_check_branch
      %24 = sbr.rel (0) target = $region9
    $region8: #{tpu_custom_call.1} parent=1 // pred_region
      %s26 = ssub.s32 2048, 2048
      %27 = vsyncadd [#allocation9], %s26
      %s28 = sshll.u32 [#allocation8], 4
      %s29 = int_to_ptr.vmem [resolvable:$true] %s28
      %34 = dma.hbm_to_vmem [thread:$0]  %s2, 2048, %s29, [#allocation9], 128, 128, 8
    $region9: #{tpu_custom_call.1} parent=1 // pred_fallthru
      _
    // Predicated region
    $region10: #{tpu_custom_call.1} parent=1 // pred_check
      _
    $region11: #{tpu_custom_call.1} parent=1 // pred_check_branch
      %36 = sbr.rel (0) target = $region13
    $region12: #{tpu_custom_call.1} parent=1 // pred_region
      _
    $region13: #{tpu_custom_call.1} parent=1 // pred_fallthru
      _
    // Predicated region
    $region14: #{tpu_custom_call.1} parent=1 // pred_check
      _
    $region15: #{tpu_custom_call.1} parent=1 // pred_check_branch
      %38 = sbr.rel (0) target = $region17
    $region16: #{tpu_custom_call.1} parent=1 // pred_region
      %39 = dma.done [#allocation6], 128
    $region17: #{tpu_custom_call.1} parent=1 // pred_fallthru
      _
    // Predicated region
    $region18: #{tpu_custom_call.1} parent=1 // pred_check
      _
    $region19: #{tpu_custom_call.1} parent=1 // pred_check_branch
      %41 = sbr.rel (0) target = $region21
    $region20: #{tpu_custom_call.1} parent=1 // pred_region
      %42 = dma.done [#allocation9], 2048
    $region21: #{tpu_custom_call.1} parent=1 // pred_fallthru
      _
    %p43 = scmp.eq.s32.totalorder 0, 0
    // Predicated region
    $region22: #{tpu_custom_call.1} parent=1 // pred_check
      %p44 = pneg %p43
    $region23: #{tpu_custom_call.1} parent=1 // pred_check_branch
      %46 = sbr.rel (%p44) target = $region25
    $region24: #{tpu_custom_call.1} parent=1 // pred_region
      %47 = vst [vmem:[#allocation2] sm:$0xff] 0.0
    $region25: #{tpu_custom_call.1} parent=1 // pred_fallthru
      _
    %v48 = vld [vmem:[#allocation5] sm:$0xff]
    %v49 = vlaneseq
    %v50 = vshrl.u32 %v49, 7
    %s51 = smul.u32 0, 8
    %v52 = vstv %s51
    %v53 = vadd.s32 %v50, %v52
    %v54 = vlaneseq
    %v55 = vand.u32 %v54, 127
    %s56 = smul.u32 0, 128
    %v57 = vstv %s56
    %v58 = vadd.s32 %v55, %v57
    %v59 = vmul.u32 %v53, 128
    %v60 = vadd.s32 %v59, %v58
    %s61 = sld [smem:[#allocation4]]
    %s62 = smul.u32 %s61, 668265295
    %v63 = vstv %s62
    %v64 = vadd.s32 %v60, %v63
    %v65 = vshra.s32 %v64, 16
    %v66 = vand.u32 %v65, 65535
    %v67 = vxor.u32 %v64, %v66
    %v68 = vmul.u32 %v67, 2129077549
    %v69 = vshra.s32 %v68, 15
    %v70 = vand.u32 %v69, 131071
    %v71 = vxor.u32 %v68, %v70
    %v72 = vmul.u32 %v71, 2221844107
    %v73 = vshra.s32 %v72, 16
    %v74 = vand.u32 %v73, 65535
    %v75 = vxor.u32 %v72, %v74
    %v76 = vand.u32 %v75, 2147483647
    %vm77 = vcmp.lt.s32.totalorder %v76, 1073741824
    %v78 = vsel %vm77, %v48, 0.0
    %v79 = vld [vmem:[#allocation2] sm:$0xff]
    %v80 = vld [vmem:[#allocation8] sm:$0xff]
    %v81 = vld [vmem:[#allocation8 + $0x8] sm:$0xff]
    %v82 = vld [vmem:[#allocation8 + $0x10] sm:$0xff]
    %v83 = vld [vmem:[#allocation8 + $0x18] sm:$0xff]
    %v84 = vld [vmem:[#allocation8 + $0x20] sm:$0xff]
    %v85 = vld [vmem:[#allocation8 + $0x28] sm:$0xff]
    %v86 = vld [vmem:[#allocation8 + $0x30] sm:$0xff]
    %v87 = vld [vmem:[#allocation8 + $0x38] sm:$0xff]
    %v88 = vld [vmem:[#allocation8 + $0x40] sm:$0xff]
    %v89 = vld [vmem:[#allocation8 + $0x48] sm:$0xff]
    %v90 = vld [vmem:[#allocation8 + $0x50] sm:$0xff]
    %v91 = vld [vmem:[#allocation8 + $0x58] sm:$0xff]
    %v92 = vld [vmem:[#allocation8 + $0x60] sm:$0xff]
    %v93 = vld [vmem:[#allocation8 + $0x68] sm:$0xff]
    %v94 = vld [vmem:[#allocation8 + $0x70] sm:$0xff]
    %v95 = vld [vmem:[#allocation8 + $0x78] sm:$0xff]
    %96 = vmatprep.subr.mxu0 0.0
    %97 = vmatpush1.msra.mxu0 %v80
    %98 = vmatprep.subr.mxu0 0.0
    %99 = vmatpush1.msra.mxu0 %v81
    %100 = vmatprep.subr.mxu0 0.0
    %101 = vmatpush1.msra.mxu0 %v82
    %102 = vmatprep.subr.mxu0 0.0
    %103 = vmatpush1.msra.mxu0 %v83
    %104 = vmatprep.subr.mxu0 0.0
    %105 = vmatpush1.msra.mxu0 %v84
    %106 = vmatprep.subr.mxu0 0.0
    %107 = vmatpush1.msra.mxu0 %v85
    %108 = vmatprep.subr.mxu0 0.0
    %109 = vmatpush1.msra.mxu0 %v86
    %110 = vmatprep.subr.mxu0 0.0
    %111 = vmatpush1.msra.mxu0 %v87
    %112 = vmatprep.subr.mxu0 0.0
    %113 = vmatpush1.msra.mxu0 %v88
    %114 = vmatprep.subr.mxu0 0.0
    %115 = vmatpush1.msra.mxu0 %v89
    %116 = vmatprep.subr.mxu0 0.0
    %117 = vmatpush1.msra.mxu0 %v90
    %118 = vmatprep.subr.mxu0 0.0
    %119 = vmatpush1.msra.mxu0 %v91
    %120 = vmatprep.subr.mxu0 0.0
    %121 = vmatpush1.msra.mxu0 %v92
    %122 = vmatprep.subr.mxu0 0.0
    %123 = vmatpush1.msra.mxu0 %v93
    %124 = vmatprep.subr.mxu0 0.0
    %125 = vmatpush1.msra.mxu0 %v94
    %126 = vmatprep.subr.mxu0 0.0
    %127 = vmatpush1.msra.mxu0 %v95
    %128 = vmatprep.subr.mxu0 0.0
    %129 = vmatpush1.msra.mxu0 0.0
    %130 = vmatprep.subr.mxu0 0.0
    %131 = vmatpush1.msra.mxu0 0.0
    %132 = vmatprep.subr.mxu0 0.0
    %133 = vmatpush1.msra.mxu0 0.0
    %134 = vmatprep.subr.mxu0 0.0
    %135 = vmatpush1.msra.mxu0 0.0
    %136 = vmatprep.subr.mxu0 0.0
    %137 = vmatpush1.msra.mxu0 0.0
    %138 = vmatprep.subr.mxu0 0.0
    %139 = vmatpush1.msra.mxu0 0.0
    %140 = vmatprep.subr.mxu0 0.0
    %141 = vmatpush1.msra.mxu0 0.0
    %142 = vmatprep.subr.mxu0 0.0
    %143 = vmatpush1.msra.mxu0 0.0
    %144 = vmatprep.subr.mxu0 0.0
    %145 = vmatpush1.msra.mxu0 0.0
    %146 = vmatprep.subr.mxu0 0.0
    %147 = vmatpush1.msra.mxu0 0.0
    %148 = vmatprep.subr.mxu0 0.0
    %149 = vmatpush1.msra.mxu0 0.0
    %150 = vmatprep.subr.mxu0 0.0
    %151 = vmatpush1.msra.mxu0 0.0
    %152 = vmatprep.subr.mxu0 0.0
    %153 = vmatpush1.msra.mxu0 0.0
    %154 = vmatprep.subr.mxu0 0.0
    %155 = vmatpush1.msra.mxu0 0.0
    %156 = vmatprep.subr.mxu0 0.0
    %157 = vmatpush1.msra.mxu0 0.0
    %158 = vmatprep.subr.mxu0 0.0
    %159 = vmatpush1.msra.mxu0 0.0
    %160 = vmatprep.mubr.f32.mxu0 0.0
    %161 = vmatmul.mubr.f32.gmra.mrb[0].mxu0 %v78
    %v162 = vpop.f32.mrb[0].mxu0
    %v163 = vadd.f32 0.0, %v162
    %v164 = vpop.f32.mrb[0].mxu0
    %165 = vdwg.mxu0
    %v166 = vadd.f32 %v79, %v163
    %167 = vst [vmem:[#allocation2] sm:$0xff] %v166
    // Predicated region
    $region26: #{tpu_custom_call.1} parent=1 // pred_check
      %p168 = pneg %p43
    $region27: #{tpu_custom_call.1} parent=1 // pred_check_branch
      %170 = sbr.rel (%p168) target = $region29
    $region28: #{tpu_custom_call.1} parent=1 // pred_region
      %v171 = vld [vmem:[#allocation2] sm:$0xff]
      %v172 = vld [vmem:[%s3] sm:$0x1]
      %v174 = vlaneseq
      %v175 = vshrl.u32 %v174, 7
      %v176 = vsub.s32 0, %v175
      %v177 = vrot.slane %v172, %v176
      %v179 = vadd.f32 %v171, %v177
      %180 = vst [vmem:[#allocation10] sm:$0xff] %v179
    $region29: #{tpu_custom_call.1} parent=1 // pred_fallthru
      _
    // Predicated region
    $region30: #{tpu_custom_call.1} parent=1 // pred_check
      _
    $region31: #{tpu_custom_call.1} parent=1 // pred_check_branch
      %182 = sbr.rel (0) target = $region33
    $region32: #{tpu_custom_call.1} parent=1 // pred_region
      %s184 = ssub.s32 128, 128
      %185 = vsyncadd [#allocation7], %s184
      %s187 = sshll.u32 [#allocation10], 4
      %s188 = int_to_ptr.vmem [resolvable:$true] %s187
      %190 = dma.vmem_to_hbm [thread:$0]  %s188, 128, %s4, [#allocation7]
    $region33: #{tpu_custom_call.1} parent=1 // pred_fallthru
      _
    // Predicated region
    $region34: #{tpu_custom_call.1} parent=1 // pred_check
      _
    $region35: #{tpu_custom_call.1} parent=1 // pred_check_branch
      %192 = sbr.rel (0) target = $region37
    $region36: #{tpu_custom_call.1} parent=1 // pred_region
      %193 = dma.done [#allocation7], 128
    $region37: #{tpu_custom_call.1} parent=1 // pred_fallthru
      _
    %194 = vsyncpa [#allocation6], 1
    %195 = vsyncpa [#allocation9], 1
    %196 = vsyncpa [#allocation7], 1

</llo_original>
